<compile_context>
chip_gen: v6e
topology: v6e:2x2x1
jax: 0.10.0
libtpu: 0.0.40
codegen_flags: <defaults>
</compile_context>

<pallas_src>
import math

import jax
import jax.numpy as jnp
from jax.experimental import pallas as pl
from jax.experimental.pallas import tpu as pltpu

_LANE = 128


def _normalize_kernel(mean_ref, inv_std_ref, img_ref, out_ref):
    # mean_ref / inv_std_ref: (padded_rows, 1) columns, resident for the whole
    # kernel (constant index_map).  Slice out this block's rows and broadcast
    # across the lane dimension.
    row_tile = img_ref.shape[0]
    r0 = pl.multiple_of(pl.program_id(0) * row_tile, row_tile)
    mu = mean_ref[pl.ds(r0, row_tile), :]
    inv = inv_std_ref[pl.ds(r0, row_tile), :]
    out_ref[...] = (img_ref[...] - mu) * inv


def _vmem_capacity_bytes():
    """Physical VMEM of the local TPU; conservative fallback if unknown."""
    try:
        cap = int(pltpu.get_tpu_info().vmem_capacity_bytes)
        if cap > 0:
            return cap
    except Exception:
        pass
    return 64 << 20  # v7x-sized fallback: safe on every generation


def _round_down(x, m):
    return (x // m) * m


def _fold_factor(rows, cols, sublane):
    """Split factor S folding (rows, cols) -> (rows*S, cols//S) so the row
    count becomes a multiple of the sublane count while columns stay a
    multiple of 128.  Returns 1 when no fold is needed / possible."""
    if rows % sublane == 0:
        return 1
    s = sublane // math.gcd(rows, sublane)
    if s > 1 and cols % s == 0 and (cols // s) % _LANE == 0:
        return s
    return 1


def _largest_aligned_divisor(cols, cap):
    """Largest multiple of 128 that divides `cols` and is <= cap (0 if none)."""
    if cols % _LANE != 0:
        return 0
    base = cols // _LANE
    for q in range(min(base, cap // _LANE), 0, -1):
        if base % q == 0:
            return q * _LANE
    return 0


def _choose_tiles(rows, cols, elem_bytes, tile_target_bytes):
    """Pick a lane-dense, VMEM-friendly (row_tile, col_tile) for a 2D slab."""
    sublane = max(8, 32 // elem_bytes)            # 8 for f32, 16 for bf16, ...
    target_elems = max(_LANE * sublane, tile_target_bytes // elem_bytes)

    # Lane (last-dim) tile: full row when it fits the budget (always legal, no
    # masked stores); otherwise the largest 128-multiple divisor of cols so the
    # trailing column block is not ragged.
    row_unit = rows if rows < sublane else sublane
    lane_cap = max(_LANE, _round_down(target_elems // row_unit, _LANE))
    if cols <= lane_cap:
        col_tile = cols
    else:
        col_tile = _largest_aligned_divisor(cols, lane_cap) or lane_cap

    # Sublane (row) tile: grow toward the byte target in sublane multiples.
    budget_rows = max(1, target_elems // col_tile)
    if budget_rows >= rows or rows <= sublane:
        row_tile = rows
    else:
        row_tile = min(rows, max(sublane, _round_down(budget_rows, sublane)))

    # Keep >= 2 blocks on a parallel axis when legal so a v7x megacore can
    # shard across both TensorCores (zero-cost no-op on v5e/v6e).
    if pl.cdiv(rows, row_tile) == 1 and pl.cdiv(cols, col_tile) == 1:
        if cols % (2 * _LANE) == 0 and cols >= 2 * _LANE:
            col_tile = cols // 2
        elif rows % (2 * sublane) == 0:
            row_tile = rows // 2
    return row_tile, col_tile


def normalization_forward(img, mean, std):
    """(img - mean[:, None, None]) / std[:, None, None] for an NCHW image."""
    n, c, h, w = img.shape
    assert mean.shape == (c,) and std.shape == (c,)

    rows, cols = n * c, h * w
    elem_bytes = jnp.dtype(img.dtype).itemsize
    sublane = max(8, 32 // elem_bytes)

    # Generation-aware VMEM budget: double-buffered img-in + out = 4x tile.
    phys_vmem = _vmem_capacity_bytes()
    footprint_budget = min(phys_vmem // 2, 48 << 20)   # 32 MiB v7x, 48 MiB v5e/v6e
    tile_target_bytes = max(1 << 20, footprint_budget // 4)
    vmem_limit_bytes = int(min(phys_vmem, footprint_budget + (16 << 20)))

    # Fold short rows (e.g. N*C = 3) so vregs run full and tiles hit target.
    s = _fold_factor(rows, cols, sublane)
    rows_f, cols_f = rows * s, cols // s

    x2d = img.reshape(rows_f, cols_f)

    mean_per_row = jnp.tile(mean.astype(img.dtype), n)          # (N*C,)
    inv_per_row = jnp.tile((1.0 / std).astype(img.dtype), n)    # (N*C,)
    if s > 1:
        mean_per_row = jnp.repeat(mean_per_row, s)
        inv_per_row = jnp.repeat(inv_per_row, s)

    row_tile, col_tile = _choose_tiles(rows_f, cols_f, elem_bytes,
                                       tile_target_bytes)
    grid = (pl.cdiv(rows_f, row_tile), pl.cdiv(cols_f, col_tile))

    # Pad the per-row vectors to the grid extent so the in-kernel slice of the
    # last (possibly partial) row block never reads out of bounds.
    padded_rows = grid[0] * row_tile
    if padded_rows != rows_f:
        pad = padded_rows - rows_f
        mean_per_row = jnp.pad(mean_per_row, (0, pad))
        inv_per_row = jnp.pad(inv_per_row, (0, pad), constant_values=1)
    mean_rows = mean_per_row.reshape(padded_rows, 1)
    inv_std_rows = inv_per_row.reshape(padded_rows, 1)

    out2d = pl.pallas_call(
        _normalize_kernel,
        out_shape=jax.ShapeDtypeStruct((rows_f, cols_f), img.dtype),
        grid=grid,
        in_specs=[
            pl.BlockSpec((padded_rows, 1), lambda i, j: (0, 0)),        # mean
            pl.BlockSpec((padded_rows, 1), lambda i, j: (0, 0)),        # 1/std
            pl.BlockSpec((row_tile, col_tile), lambda i, j: (i, j)),    # img
        ],
        out_specs=pl.BlockSpec((row_tile, col_tile), lambda i, j: (i, j)),
        compiler_params=pltpu.CompilerParams(
            dimension_semantics=("parallel", "parallel"),
            vmem_limit_bytes=vmem_limit_bytes,
        ),
        cost_estimate=pl.CostEstimate(
            flops=2 * rows * cols,
            transcendentals=0,
            bytes_accessed=2 * rows * cols * elem_bytes,
        ),
    )(mean_rows, inv_std_rows, x2d)

    return out2d.reshape(n, c, h, w)


if __name__ == "__main__":
    # Classic VGG ImageNet mean/std the style-transfer tutorial passes in.
    mean = jnp.array([0.485, 0.456, 0.406], dtype=jnp.float32)
    std = jnp.array([0.229, 0.224, 0.225], dtype=jnp.float32)

    key = jax.random.PRNGKey(0)

    # Small NCHW input consistent with the module: batch=2, channels=3, 16x16.
    img = jax.random.uniform(key, (2, 3, 16, 16), dtype=jnp.float32)
    out = jax.block_until_ready(normalization_forward(img, mean, std))
    ref = (img - mean[None, :, None, None]) / std[None, :, None, None]
    assert out.shape == img.shape and out.dtype == img.dtype
    assert jnp.allclose(out, ref, atol=1e-6, rtol=1e-6)

    # Also exercise the short-row fold path (N*C = 3 -> folded rows = 24).
    img2 = jax.random.uniform(jax.random.PRNGKey(0), (1, 3, 64, 128),
                              dtype=jnp.float32)
    out2 = jax.block_until_ready(normalization_forward(img2, mean, std))
    ref2 = (img2 - mean[None, :, None, None]) / std[None, :, None, None]
    assert jnp.allclose(out2, ref2, atol=1e-6, rtol=1e-6)

    print("KERNEL_OK")
</pallas_src>

<mosaic_0001>
module attributes {stable_mosaic.version = 11 : i64} {
  func.func @_normalize_kernel(%arg0: i32, %arg1: i32, %arg2: memref<6x1xf32, #tpu.memory_space<vmem>>, %arg3: memref<6x1xf32, #tpu.memory_space<vmem>>, %arg4: memref<6x128xf32, #tpu.memory_space<vmem>>, %arg5: memref<6x128xf32, #tpu.memory_space<vmem>>) attributes {dimension_semantics = [#tpu.dimension_semantics<parallel>, #tpu.dimension_semantics<parallel>], iteration_bounds = array<i64: 1, 2>, scalar_prefetch = 0 : i64, scratch_operands = 0 : i64, tpu.core_type = #tpu.core_type<tc>, window_params = [{pipeline_mode = #tpu.pipeline_mode<synchronous>, transform_indices = @transform_0, window_bounds = array<i64: 6, 1>}, {pipeline_mode = #tpu.pipeline_mode<synchronous>, transform_indices = @transform_1, window_bounds = array<i64: 6, 1>}, {transform_indices = @transform_2, window_bounds = array<i64: 6, 128>}, {transform_indices = @transform_3, window_bounds = array<i64: 6, 128>}]} {
    %c6_i32 = arith.constant 6 : i32
    %0 = arith.muli %arg0, %c6_i32 : i32
    %1 = tpu.assume_multiple %0, 6 : i32
    %2 = arith.index_cast %1 : i32 to index
    %c0 = arith.constant 0 : index
    %3 = vector.load %arg2[%2, %c0] : memref<6x1xf32, #tpu.memory_space<vmem>>, vector<6x1xf32>
    %4 = arith.index_cast %1 : i32 to index
    %c0_0 = arith.constant 0 : index
    %5 = vector.load %arg3[%4, %c0_0] : memref<6x1xf32, #tpu.memory_space<vmem>>, vector<6x1xf32>
    %c0_1 = arith.constant 0 : index
    %c0_2 = arith.constant 0 : index
    %6 = vector.load %arg4[%c0_1, %c0_2] : memref<6x128xf32, #tpu.memory_space<vmem>>, vector<6x128xf32>
    %7 = vector.broadcast %3 : vector<6x1xf32> to vector<6x128xf32>
    %8 = arith.subf %6, %7 : vector<6x128xf32>
    %9 = vector.broadcast %5 : vector<6x1xf32> to vector<6x128xf32>
    %10 = arith.mulf %8, %9 : vector<6x128xf32>
    %c0_3 = arith.constant 0 : index
    %c0_4 = arith.constant 0 : index
    %11 = vector.load %arg5[%c0_3, %c0_4] : memref<6x128xf32, #tpu.memory_space<vmem>>, vector<6x128xf32>
    tpu.vector_store %arg5[%c0_3, %c0_4], %10 {strides = array<i32>} : memref<6x128xf32, #tpu.memory_space<vmem>>, vector<6x128xf32>,
    return
  }
  func.func @transform_0(%arg0: i32, %arg1: i32) -> (i32, i32) {
    %c0_i32 = arith.constant 0 : i32
    %c0_i32_0 = arith.constant 0 : i32
    %c0_i32_1 = arith.constant 0 : i32
    return %c0_i32, %c0_i32_0 : i32, i32
  }
  func.func @transform_1(%arg0: i32, %arg1: i32) -> (i32, i32) {
    %c0_i32 = arith.constant 0 : i32
    %c0_i32_0 = arith.constant 0 : i32
    %c0_i32_1 = arith.constant 0 : i32
    return %c0_i32, %c0_i32_0 : i32, i32
  }
  func.func @transform_2(%arg0: i32, %arg1: i32) -> (i32, i32) {
    %c0_i32 = arith.constant 0 : i32
    return %arg0, %arg1 : i32, i32
  }
  func.func @transform_3(%arg0: i32, %arg1: i32) -> (i32, i32) {
    %c0_i32 = arith.constant 0 : i32
    return %arg0, %arg1 : i32, i32
  }
}

</mosaic_0001>

<llo_original>
// kernel: tpu_custom_call.1
$region0: #{tpu_custom_call.1}
  #allocation0 [shape = 'u32[]', space=smem, size = 0x4, offset = 0x4, fixed_abs, tag = 'smem constant byte address 0x4 - core index']
  #allocation1 [shape = 'u32[144,128]{1,0:T(1,128)}', space=vmem, size = 0x12000, scoped, tag = 'internal scratch']
  %s0 = inlined_call_operand.vmem [shape: f32[6,1], index: 0, kind: input, shape index: {}]
  %s1 = inlined_call_operand.vmem [shape: f32[6,1], index: 1, kind: input, shape index: {}]
  %s2 = inlined_call_operand.vmem [shape: f32[6,256], index: 2, kind: input, shape index: {}]
  %s3 = inlined_call_operand.hbm [shape: f32[6,256], index: 3, kind: output, shape index: {}]
  %s4 = sld [smem:[#allocation0]]
  $region45: #{tpu_custom_call.1} parent=0
    _
  %s6 = ssub.s32 1, %s4
  %s7 = scalar_select 0, %s6, %s4
  $region1: #{tpu_custom_call.1} parent=0
    #allocation2 [shape = 'u8[8192]{0}', space=vmem, size = 0x2000, scoped, tag = 'output window, operand 0']
    #allocation3 [shape = 's32[2]{0}', space=sflag, size = 0x8, scoped, tag = 'scoped memory for tpu_custom_call.1']
    %8 = vsyncpa [#allocation3], 0
    %s9 = scalar_lea.sflag [#allocation3], 1
    %10 = vsyncpa %s9, 0
    loop: start=0, step=1, limit=4
    $region2: #{tpu_custom_call.1} parent=1 // loop_pre_header
      _
    $region3: #{tpu_custom_call.1} parent=1 // loop_header
      %s12 = sphi 0, %s16
      %p13 = scmp.ge.s32.totalorder %s12, 4
      %s19 = sphi 0, %s31
      %s20 = sphi 0, %s27
      %s21 = sphi 0, %s19
      %s22 = sphi 0, %s20
      %s23 = sphi 0, %s21
      %s24 = sphi 0, %s22
      %s32 = sphi 0, %s32
      %s34 = sphi 0, %s32
      %s35 = sphi 0, %s34
      %s49 = sphi 0, %s35
      %s53 = sphi 0, %s53
      %s55 = sphi 0, %s53
      %s56 = sphi 0, %s55
      %s70 = sphi 0, %s56
      %s78 = sphi 0, %s80
      %s81 = sphi 0, %s78
      %s82 = sphi 0, %s81
      %s98 = sphi 0, %s82
      %s106 = sphi 0, %s108
      %s109 = sphi 0, %s106
      %s110 = sphi 0, %s109
      %s126 = sphi 0, %s110
    $region4: #{tpu_custom_call.1} parent=1 // loop_header_branch
      %15 = sbr.rel (%p13) target = $region8
    $region5: #{tpu_custom_call.1} parent=1 // loop_body
      %s17 = ssub.s32 %s12, 1
      %s18 = ssub.s32 %s12, 2
      %s25 = sadd.s32 1, %s20
      %p26 = scmp.ge.s32.totalorder %s25, 2
      %s27 = scalar_select %p26, 0, %s25
      %s28 = sadd.s32 1, %s19
      %s29 = scalar_select %p26, %s28, %s19
      %p30 = scmp.ge.s32.totalorder %s29, 1
      %s31 = scalar_select %p30, 0, %s29
      %s33 = sadd.s32 %s32, 1
      %p36 = scmp.eq.s32.totalorder %s12, 1
      %p37 = scmp.ne.s32.totalorder %s32, %s34
      %p38 = scmp.eq.s32.totalorder %s12, 0
      %p39 = por %p37, %p38
      %p40 = scmp.ne.s32.totalorder %s32, %s34
      %p41 = scmp.eq.s32.totalorder %s17, 1
      %p42 = por %p40, %p41
      %p43 = scmp.ne.s32.totalorder %s34, %s35
      %p44 = scmp.eq.s32.totalorder %s17, 0
      %p45 = por %p43, %p44
      %p46 = scmp.ne.s32.totalorder %s34, %s35
      %p47 = scmp.eq.s32.totalorder %s18, 1
      %p48 = por %p46, %p47
      %p50 = scmp.ne.s32.totalorder %s35, %s49
      %p51 = scmp.eq.s32.totalorder %s18, 0
      %p52 = por %p50, %p51
      %s54 = sadd.s32 %s53, 1
      %p57 = scmp.eq.s32.totalorder %s12, 1
      %p58 = scmp.ne.s32.totalorder %s53, %s55
      %p59 = scmp.eq.s32.totalorder %s12, 0
      %p60 = por %p58, %p59
      %p61 = scmp.ne.s32.totalorder %s53, %s55
      %p62 = scmp.eq.s32.totalorder %s17, 1
      %p63 = por %p61, %p62
      %p64 = scmp.ne.s32.totalorder %s55, %s56
      %p65 = scmp.eq.s32.totalorder %s17, 0
      %p66 = por %p64, %p65
      %p67 = scmp.ne.s32.totalorder %s55, %s56
      %p68 = scmp.eq.s32.totalorder %s18, 1
      %p69 = por %p67, %p68
      %p71 = scmp.ne.s32.totalorder %s56, %s70
      %p72 = scmp.eq.s32.totalorder %s18, 0
      %p73 = por %p71, %p72
      %s74 = ssub.s32 %s19, %s31
      %s75 = ssub.s32 %s20, %s27
      %s76 = sor.u32 %s74, %s75
      %p77 = scmp.eq.s32.totalorder %s76, 0
      %s79 = sadd.s32 %s78, 1
      %s80 = scalar_select %p77, %s78, %s79
      %p83 = pneg %p77
      %p84 = scmp.eq.s32.totalorder %s12, 1
      %p85 = por %p83, %p84
      %p86 = scmp.ne.s32.totalorder %s78, %s81
      %p87 = scmp.eq.s32.totalorder %s12, 0
      %p88 = por %p86, %p87
      %p89 = scmp.ne.s32.totalorder %s78, %s81
      %p90 = scmp.eq.s32.totalorder %s17, 1
      %p91 = por %p89, %p90
      %p92 = scmp.ne.s32.totalorder %s81, %s82
      %p93 = scmp.eq.s32.totalorder %s17, 0
      %p94 = por %p92, %p93
      %p95 = scmp.ne.s32.totalorder %s81, %s82
      %p96 = scmp.eq.s32.totalorder %s18, 1
      %p97 = por %p95, %p96
      %p99 = scmp.ne.s32.totalorder %s82, %s98
      %p100 = scmp.eq.s32.totalorder %s18, 0
      %p101 = por %p99, %p100
      %s102 = ssub.s32 %s19, %s31
      %s103 = ssub.s32 %s20, %s27
      %s104 = sor.u32 %s102, %s103
      %p105 = scmp.eq.s32.totalorder %s104, 0
      %s107 = sadd.s32 %s106, 1
      %s108 = scalar_select %p105, %s106, %s107
      %p111 = pneg %p105
      %p112 = scmp.eq.s32.totalorder %s12, 1
      %p113 = por %p111, %p112
      %p114 = scmp.ne.s32.totalorder %s106, %s109
      %p115 = scmp.eq.s32.totalorder %s12, 0
      %p116 = por %p114, %p115
      %p117 = scmp.ne.s32.totalorder %s106, %s109
      %p118 = scmp.eq.s32.totalorder %s17, 1
      %p119 = por %p117, %p118
      %p120 = scmp.ne.s32.totalorder %s109, %s110
      %p121 = scmp.eq.s32.totalorder %s17, 0
      %p122 = por %p120, %p121
      %p123 = scmp.ne.s32.totalorder %s109, %s110
      %p124 = scmp.eq.s32.totalorder %s18, 1
      %p125 = por %p123, %p124
      %p127 = scmp.ne.s32.totalorder %s110, %s126
      %p128 = scmp.eq.s32.totalorder %s18, 0
      %p129 = por %p127, %p128
      %p130 = scmp.le.s32.totalorder 1, %s12
      %p131 = scmp.lt.s32.totalorder %s12, 3
      %p132 = pnand %p130, %p131
      %p133 = pneg %p132
      // Predicated region
      $region9: #{tpu_custom_call.1} parent=5 // pred_check
        _
      $region10: #{tpu_custom_call.1} parent=5 // pred_check_branch
        %135 = sbr.rel (%p132) target = $region12
      $region11: #{tpu_custom_call.1} parent=5 // pred_region
        %s136 = ssub.s32 %s12, 1
        // Predicated region
        $region13: #{tpu_custom_call.1} parent=11 // pred_check
          %p137 = pneg %p45
        $region14: #{tpu_custom_call.1} parent=11 // pred_check_branch
          %139 = sbr.rel (%p137) target = $region16
        $region15: #{tpu_custom_call.1} parent=11 // pred_region
          _
        $region16: #{tpu_custom_call.1} parent=11 // pred_fallthru
          _
        // Predicated region
        $region17: #{tpu_custom_call.1} parent=11 // pred_check
          %p140 = pneg %p66
        $region18: #{tpu_custom_call.1} parent=11 // pred_check_branch
          %142 = sbr.rel (%p140) target = $region20
        $region19: #{tpu_custom_call.1} parent=11 // pred_region
          _
        $region20: #{tpu_custom_call.1} parent=11 // pred_fallthru
          _
      $region12: #{tpu_custom_call.1} parent=5 // pred_fallthru
        _
      %p143 = scmp.lt.s32.totalorder %s12, 2
      // Predicated region
      $region21: #{tpu_custom_call.1} parent=5 // pred_check
        %p144 = pneg %p143
      $region22: #{tpu_custom_call.1} parent=5 // pred_check_branch
        %146 = sbr.rel (%p144) target = $region24
      $region23: #{tpu_custom_call.1} parent=5 // pred_region
        // Predicated region
        $region25: #{tpu_custom_call.1} parent=23 // pred_check
          %p147 = pneg %p88
        $region26: #{tpu_custom_call.1} parent=23 // pred_check_branch
          %149 = sbr.rel (%p147) target = $region28
        $region27: #{tpu_custom_call.1} parent=23 // pred_region
          %p150 = scmp.lt.s32.totalorder %s19, 0
          %s151 = scalar_select %p150, %s19, 0
          %p152 = scmp.lt.s32.totalorder %s20, 1
          %s153 = scalar_select %p152, %s20, 1
          %s154 = smul.addr %s151, 2
          %s155 = sadd.s32 %s153, %s154
          %s156 = smul.addr %s155, 8
          %s157 = scalar_lea.vmem %s2, %s156
        $region28: #{tpu_custom_call.1} parent=23 // pred_fallthru
          _
      $region24: #{tpu_custom_call.1} parent=5 // pred_fallthru
        _
      %p158 = scmp.le.s32.totalorder 1, %s12
      %p159 = scmp.lt.s32.totalorder %s12, 3
      %p160 = pnand %p158, %p159
      %p161 = pneg %p160
      // Predicated region
      $region29: #{tpu_custom_call.1} parent=5 // pred_check
        _
      $region30: #{tpu_custom_call.1} parent=5 // pred_check_branch
        %163 = sbr.rel (%p160) target = $region32
      $region31: #{tpu_custom_call.1} parent=5 // pred_region
        %s164 = ssub.s32 %s12, 1
        %p165 = pneg %p45
        %p166 = pneg %p42
        %p167 = pneg %p66
        %p168 = pneg %p63
        %p169 = scmp.lt.s32.totalorder %s21, 0
        %s170 = scalar_select %p169, %s21, 0
        %p171 = scmp.lt.s32.totalorder %s22, 1
        %s172 = scalar_select %p171, %s22, 1
        %s173 = smul.addr %s170, 2
        %s174 = sadd.s32 %s172, %s173
        %s175 = smul.addr %s174, 8
        %s176 = scalar_lea.vmem %s2, %s175
        %p177 = pneg %p94
        %p178 = pneg %p91
        %p179 = pneg %p122
        %p180 = pneg %p119
        %s181 = sand.u32 %s109, 1
        %s182 = scalar_lea.sflag [#allocation3], %s181
        %s183 = sand.u32 %s109, 1
        %s184 = smul.addr %s183, 8
        %s185 = scalar_lea.vmem [#allocation2], %s184
        %p186 = scmp.lt.s32.totalorder %s21, 0
        %s187 = scalar_select %p186, %s21, 0
        %p188 = scmp.lt.s32.totalorder %s22, 1
        %s189 = scalar_select %p188, %s22, 1
        %s190 = smul.addr %s187, 2
        %s191 = sadd.s32 %s189, %s190
        %s192 = smul.addr %s191, 8
        %s193 = scalar_lea.vmem %s2, %s192
        %s194 = smul.u32 %s21, 6
        %s195 = scalar_lea.vmem %s0, %s194
        %v196 = vld [vmem:[%s195] sm:$0x3f]
        %s197 = scalar_lea.vmem %s1, %s194
        %v198 = vld [vmem:[%s197] sm:$0x3f]
        %v199 = vld [vmem:[%s193] sm:$0x3f]
        %201 = vset.pattern.permute.xlu0 0
        %202 = vperm.xlu0 %201, %v196
        %v203 = vpop.permute.xlu0 %202
        %v205 = vsub.f32 %v199, %v203
        %207 = vset.pattern.permute.xlu0 0
        %208 = vperm.xlu0 %207, %v198
        %v209 = vpop.permute.xlu0 %208
        %v211 = vmul.f32 %v205, %v209
        %212 = vst [vmem:[%s185] sm:$0x3f] %v211
        %s213 = sand.u32 %s109, 1
        %s214 = scalar_lea.sflag [#allocation3], %s213
        %s215 = sand.u32 %s109, 1
        %s216 = smul.addr %s215, 8
        %s217 = scalar_lea.vmem [#allocation2], %s216
        // Predicated region
        $region33: #{tpu_custom_call.1} parent=31 // pred_check
          %p218 = pneg %p119
        $region34: #{tpu_custom_call.1} parent=31 // pred_check_branch
          %220 = sbr.rel (%p218) target = $region36
        $region35: #{tpu_custom_call.1} parent=31 // pred_region
          %s222 = ssub.s32 128, 128
          %223 = vsyncadd %s214, %s222
          %s224 = smul.addr %s21, 2
          %s225 = sadd.s32 %s22, %s224
          %s226 = smul.addr %s225, 128
          %s227 = scalar_lea.hbm %s3, %s226
          %s229 = sshll.u32 %s217, 4
          %s230 = int_to_ptr.vmem [resolvable:$true] %s229
          %232 = dma.vmem_to_hbm [thread:$0]  %s230, 128, %s227, %s214
        $region36: #{tpu_custom_call.1} parent=31 // pred_fallthru
          _
      $region32: #{tpu_custom_call.1} parent=5 // pred_fallthru
        _
      %p233 = scmp.le.s32.totalorder 2, %s12
      // Predicated region
      $region37: #{tpu_custom_call.1} parent=5 // pred_check
        %p234 = pneg %p233
      $region38: #{tpu_custom_call.1} parent=5 // pred_check_branch
        %236 = sbr.rel (%p234) target = $region40
      $region39: #{tpu_custom_call.1} parent=5 // pred_region
        %s237 = ssub.s32 %s12, 2
        // Predicated region
        $region41: #{tpu_custom_call.1} parent=39 // pred_check
          %p238 = pneg %p125
        $region42: #{tpu_custom_call.1} parent=39 // pred_check_branch
          %240 = sbr.rel (%p238) target = $region44
        $region43: #{tpu_custom_call.1} parent=39 // pred_region
          %s241 = sand.u32 %s110, 1
          %s242 = scalar_lea.sflag [#allocation3], %s241
          %s243 = sand.u32 %s110, 1
          %s244 = smul.addr %s243, 8
          %s245 = scalar_lea.vmem [#allocation2], %s244
          %246 = dma.done %s242, 128
        $region44: #{tpu_custom_call.1} parent=39 // pred_fallthru
          _
      $region40: #{tpu_custom_call.1} parent=5 // pred_fallthru
        _
    $region6: #{tpu_custom_call.1} parent=1 // loop_footer
      %s16 = sadd.s32 1, %s12
    $region7: #{tpu_custom_call.1} parent=1 // loop_footer_branch
      %11 = sbr.rel target = $region3
    $region8: #{tpu_custom_call.1} parent=1 // loop_exit
      _
    %247 = vsyncpa [#allocation3], 1
    %s248 = scalar_lea.sflag [#allocation3], 1
    %249 = vsyncpa %s248, 1

</llo_original>
